<compile_context>
chip_gen: v5e
topology: v5e:2x2
jax: 0.10.0
libtpu: 0.0.40
codegen_flags: <defaults>
</compile_context>

<pallas_src>
import math
import functools

import jax
import jax.numpy as jnp
from jax import lax
from jax.experimental import pallas as pl
from jax.experimental.pallas import tpu as pltpu

# ---- ELIF parameters (deterministic, finite choices; defaults R=inf, C=0 give tau=nan) ----
U_REST       = -70.0
THRESHOLD_R  = -55.0
THRESHOLD_RH = -55.0
DELTA_T      = 10.0
R            = 5.0          # membrane resistance (modifiable param; default np.inf is unusable)
C            = 2.0          # capacitance -> tau = R*C = 10
TAU          = R * C
DT           = 1.0
TAU_S        = 10.0         # spike-trace time constant (ELIF default)
TRACE_SCALE  = 1.0
TRACE_DECAY  = math.exp(-DT / TAU_S)        # exp(-dt/tau_s), compile-time constant

# ---- constant folding of the membrane-potential update ----
ALPHA       = DT / TAU                      # 0.1
A_U         = 1.0 - ALPHA                   # coefficient of u
A_REST      = ALPHA * U_REST                # constant offset
A_IN        = ALPHA * R                     # coefficient of input trace
INV_DELTA_T = 1.0 / DELTA_T                 # multiply, don't divide
# threshold shift folded INTO the exp coefficient (shortens the u->exp->u serial chain):
A_EXP2      = ALPHA * DELTA_T * math.exp(-THRESHOLD_RH * INV_DELTA_T)

POP_SHAPE = (2, 4, 16, 16)                  # population topology
N = 2 * 4 * 16 * 16                         # 2048
LANES = 128
ROWS = N // LANES                           # 16  -> single (16, 128) lane-dense slab

# Chunk cap: CHUNK*16*128*4 B = CHUNK*8 KiB per buffer, double-buffered.
# 256 -> 2 x 2 MiB, comfortably inside v5e's 16 MiB scoped default (and v6e/v7x's 32 MiB).
MAX_CHUNK = 256


def _pick_chunk(T: int) -> int:
    """Largest divisor of T that is <= MAX_CHUNK (falls back to 1 for prime T)."""
    for c in range(min(T, MAX_CHUNK), 0, -1):
        if T % c == 0:
            return c
    return 1


def _make_kernel(chunk: int):
    """Build the fused multi-step ELIF kernel for a given (static) chunk size."""
    unroll = True if chunk <= 32 else 8

    def elif_fused_kernel(x_ref, u0_ref, tr0_ref, u_ref, s_ref, tr_ref):
        c = pl.program_id(0)

        # Load initial state into the VMEM-resident output buffers on the first chunk.
        @pl.when(c == 0)
        def _():
            u_ref[...] = u0_ref[...]
            tr_ref[...] = tr0_ref[...]

        def step(i, carry):
            u, tr, _ = carry
            x = x_ref[i]                                     # (ROWS, LANES) input trace, step i
            # compute_potential (fully folded; exp goes to the EUP slot).
            u = A_U * u + A_REST + A_EXP2 * jnp.exp(u * INV_DELTA_T) + A_IN * x
            # compute_spike + reset-to-rest.
            s = u >= THRESHOLD_R
            s_f = s.astype(jnp.float32)
            u = jnp.where(s, jnp.float32(U_REST), u)
            # NeuralPopulation.forward: additive spike-trace update.
            tr = tr * TRACE_DECAY + TRACE_SCALE * s_f
            return u, tr, s_f

        u_in = u_ref[...]
        tr_in = tr_ref[...]
        s_init = jnp.zeros_like(u_in)
        u_out, tr_out, s_f = lax.fori_loop(0, chunk, step, (u_in, tr_in, s_init),
                                           unroll=unroll)

        # Write state back once per chunk (stays VMEM-resident across the grid).
        u_ref[...] = u_out
        tr_ref[...] = tr_out

        # Spike output only needs the final step's value -> store once, on the last chunk.
        @pl.when(c == pl.num_programs(0) - 1)
        def _():
            s_ref[...] = s_f

    return elif_fused_kernel


@jax.jit
def elif_forward(traces_in_seq, u_state, traces_state):
    """Run T consecutive ELIF forward steps in one pallas_call.

    traces_in_seq : float32 (T, *POP_SHAPE) per-step input spike traces.
    u_state, traces_state : float32 POP_SHAPE initial state.
    Returns (u_final, s_final (bool), traces_final), each of POP_SHAPE,
    i.e. the module state after T calls to forward().
    """
    T = traces_in_seq.shape[0]
    chunk = _pick_chunk(T)
    n_chunks = T // chunk

    x = traces_in_seq.reshape(T, ROWS, LANES).astype(jnp.float32)
    u = u_state.reshape(ROWS, LANES).astype(jnp.float32)
    tr = traces_state.reshape(ROWS, LANES).astype(jnp.float32)

    # State slabs: constant block index -> stay resident in VMEM across the whole time grid,
    # written back to HBM only once at the end.
    state_spec = pl.BlockSpec((ROWS, LANES), lambda t: (0, 0))
    # Per-chunk input: streamed along the time axis (auto double-buffered; the chunk-sized
    # DMA is hidden behind the previous chunk's `chunk` steps of EUP/VPU compute).
    x_spec = pl.BlockSpec((chunk, ROWS, LANES), lambda t: (t, 0, 0))

    u_new, s_f, tr_new = pl.pallas_call(
        _make_kernel(chunk),
        out_shape=(
            jax.ShapeDtypeStruct((ROWS, LANES), jnp.float32),   # u
            jax.ShapeDtypeStruct((ROWS, LANES), jnp.float32),   # spikes (0/1 float)
            jax.ShapeDtypeStruct((ROWS, LANES), jnp.float32),   # traces
        ),
        grid_spec=pltpu.PrefetchScalarGridSpec(
            num_scalar_prefetch=0,
            grid=(n_chunks,),
            in_specs=[x_spec, state_spec, state_spec],
            out_specs=[state_spec, state_spec, state_spec],
        ),
        # Time axis is a sequential recurrence -> "arbitrary"; nothing to megacore-shard here.
        compiler_params=pltpu.CompilerParams(
            dimension_semantics=("arbitrary",)),
        # Update state buffers in place (u_state -> u_out, traces_state -> traces_out).
        input_output_aliases={1: 0, 2: 2},
    )(x, u, tr)

    # Bool conversion stays fused under this jit; no extra pallas_call / HBM pass.
    return (u_new.reshape(POP_SHAPE),
            (s_f > 0.5).reshape(POP_SHAPE),
            tr_new.reshape(POP_SHAPE))


if __name__ == "__main__":
    key = jax.random.PRNGKey(0)
    T = 8   # number of fused simulation steps

    # Per-step input spike traces (pre-synaptic drive), small positive values.
    traces_in_seq = jax.random.uniform(key, (T,) + POP_SHAPE, dtype=jnp.float32,
                                       minval=0.0, maxval=4.0)

    # State init exactly as in __init__ / reset_state_variables:
    u0 = jnp.full(POP_SHAPE, U_REST, dtype=jnp.float32)   # u = ones(shape) * u_rest
    tr0 = jnp.zeros(POP_SHAPE, dtype=jnp.float32)         # traces = zeros(shape)

    u, s, tr = elif_forward(traces_in_seq, u0, tr0)
    jax.block_until_ready((u, s, tr))

    # Pure-JAX reference of the original (unfolded) module step, threaded over T steps.
    def ref_step(x, u, t):
        du = (DT / TAU) * (u - U_REST
                           - DELTA_T * jnp.exp((u - THRESHOLD_RH) / DELTA_T)
                           - R * x)
        u = u - du
        s = u >= THRESHOLD_R
        u = jnp.where(s, U_REST, u)
        t = t * TRACE_DECAY + TRACE_SCALE * s.astype(jnp.float32)
        return u, s, t

    ur, trr = u0, tr0
    sr = jnp.zeros(POP_SHAPE, dtype=bool)
    for step in range(T):
        ur, sr, trr = ref_step(traces_in_seq[step], ur, trr)

    assert jnp.allclose(u, ur, atol=1e-3, rtol=1e-4)
    assert bool(jnp.all(s == sr))
    assert jnp.allclose(tr, trr, atol=1e-3, rtol=1e-4)

    print("KERNEL_OK")
</pallas_src>

<mosaic_0001>
module attributes {stable_mosaic.version = 11 : i64} {
  func.func @elif_fused_kernel(%arg0: i32, %arg1: memref<8x16x128xf32, #tpu.memory_space<vmem>>, %arg2: memref<16x128xf32, #tpu.memory_space<vmem>>, %arg3: memref<16x128xf32, #tpu.memory_space<vmem>>, %arg4: memref<16x128xf32, #tpu.memory_space<vmem>>, %arg5: memref<16x128xf32, #tpu.memory_space<vmem>>, %arg6: memref<16x128xf32, #tpu.memory_space<vmem>>) attributes {dimension_semantics = [#tpu.dimension_semantics<arbitrary>], iteration_bounds = array<i64: 1>, scalar_prefetch = 0 : i64, scratch_operands = 0 : i64, tpu.core_type = #tpu.core_type<tc>, window_params = [{transform_indices = @transform_0, window_bounds = array<i64: 8, 16, 128>}, {pipeline_mode = #tpu.pipeline_mode<synchronous>, transform_indices = @transform_1, window_bounds = array<i64: 16, 128>}, {pipeline_mode = #tpu.pipeline_mode<synchronous>, transform_indices = @transform_2, window_bounds = array<i64: 16, 128>}, {pipeline_mode = #tpu.pipeline_mode<synchronous>, transform_indices = @transform_3, window_bounds = array<i64: 16, 128>}, {pipeline_mode = #tpu.pipeline_mode<synchronous>, transform_indices = @transform_4, window_bounds = array<i64: 16, 128>}, {pipeline_mode = #tpu.pipeline_mode<synchronous>, transform_indices = @transform_5, window_bounds = array<i64: 16, 128>}]} {
    %c0_i32 = arith.constant 0 : i32
    %0 = arith.cmpi eq, %arg0, %c0_i32 : i32
    %1 = arith.extui %0 : i1 to i32
    %c0_i32_0 = arith.constant 0 : i32
    %2 = arith.cmpi ne, %1, %c0_i32_0 : i32
    scf.if %2 {
      %c0_99 = arith.constant 0 : index
      %c0_100 = arith.constant 0 : index
      %227 = vector.load %arg2[%c0_99, %c0_100] : memref<16x128xf32, #tpu.memory_space<vmem>>, vector<16x128xf32>
      %c0_101 = arith.constant 0 : index
      %c0_102 = arith.constant 0 : index
      %228 = vector.load %arg4[%c0_101, %c0_102] : memref<16x128xf32, #tpu.memory_space<vmem>>, vector<16x128xf32>
      tpu.vector_store %arg4[%c0_101, %c0_102], %227 {strides = array<i32>} : memref<16x128xf32, #tpu.memory_space<vmem>>, vector<16x128xf32>,
      %c0_103 = arith.constant 0 : index
      %c0_104 = arith.constant 0 : index
      %229 = vector.load %arg3[%c0_103, %c0_104] : memref<16x128xf32, #tpu.memory_space<vmem>>, vector<16x128xf32>
      %c0_105 = arith.constant 0 : index
      %c0_106 = arith.constant 0 : index
      %230 = vector.load %arg6[%c0_105, %c0_106] : memref<16x128xf32, #tpu.memory_space<vmem>>, vector<16x128xf32>
      tpu.vector_store %arg6[%c0_105, %c0_106], %229 {strides = array<i32>} : memref<16x128xf32, #tpu.memory_space<vmem>>, vector<16x128xf32>,
    } else {
    }
    %c0 = arith.constant 0 : index
    %c0_1 = arith.constant 0 : index
    %3 = vector.load %arg4[%c0, %c0_1] : memref<16x128xf32, #tpu.memory_space<vmem>>, vector<16x128xf32>
    %c0_2 = arith.constant 0 : index
    %c0_3 = arith.constant 0 : index
    %4 = vector.load %arg6[%c0_2, %c0_3] : memref<16x128xf32, #tpu.memory_space<vmem>>, vector<16x128xf32>
    %cst = arith.constant 0.000000e+00 : f32
    %5 = vector.broadcast %cst : f32 to vector<16x128xf32>
    %c0_i32_4 = arith.constant 0 : i32
    %6 = arith.index_cast %c0_i32_4 : i32 to index
    %c0_5 = arith.constant 0 : index
    %c0_6 = arith.constant 0 : index
    %7 = vector.load %arg1[%6, %c0_5, %c0_6] : memref<8x16x128xf32, #tpu.memory_space<vmem>>, vector<1x16x128xf32>
    %8 = vector.shape_cast %7 : vector<1x16x128xf32> to vector<16x128xf32>
    %cst_7 = arith.constant 0.899999976 : f32
    %9 = vector.broadcast %cst_7 : f32 to vector<16x128xf32>
    %10 = arith.mulf %9, %3 : vector<16x128xf32>
    %cst_8 = arith.constant -7.000000e+00 : f32
    %11 = vector.broadcast %cst_8 : f32 to vector<16x128xf32>
    %12 = arith.addf %10, %11 : vector<16x128xf32>
    %cst_9 = arith.constant 1.000000e-01 : f32
    %13 = vector.broadcast %cst_9 : f32 to vector<16x128xf32>
    %14 = arith.mulf %3, %13 : vector<16x128xf32>
    %15 = math.exp %14 : vector<16x128xf32>
    %cst_10 = arith.constant 244.691925 : f32
    %16 = vector.broadcast %cst_10 : f32 to vector<16x128xf32>
    %17 = arith.mulf %16, %15 : vector<16x128xf32>
    %18 = arith.addf %12, %17 : vector<16x128xf32>
    %cst_11 = arith.constant 5.000000e-01 : f32
    %19 = vector.broadcast %cst_11 : f32 to vector<16x128xf32>
    %20 = arith.mulf %19, %8 : vector<16x128xf32>
    %21 = arith.addf %18, %20 : vector<16x128xf32>
    %cst_12 = arith.constant -5.500000e+01 : f32
    %22 = vector.broadcast %cst_12 : f32 to vector<16x128xf32>
    %23 = arith.cmpf oge, %21, %22 : vector<16x128xf32>
    %24 = arith.extui %23 : vector<16x128xi1> to vector<16x128xi32>
    %25 = arith.sitofp %24 : vector<16x128xi32> to vector<16x128xf32>
    %cst_13 = arith.constant -7.000000e+01 : f32
    %26 = vector.broadcast %cst_13 : f32 to vector<16x128xf32>
    %27 = arith.select %23, %26, %21 : vector<16x128xi1>, vector<16x128xf32>
    %cst_14 = arith.constant 0.904837429 : f32
    %28 = vector.broadcast %cst_14 : f32 to vector<16x128xf32>
    %29 = arith.mulf %4, %28 : vector<16x128xf32>
    %cst_15 = arith.constant 1.000000e+00 : f32
    %30 = vector.broadcast %cst_15 : f32 to vector<16x128xf32>
    %31 = arith.mulf %30, %25 : vector<16x128xf32>
    %32 = arith.addf %29, %31 : vector<16x128xf32>
    %c1_i32 = arith.constant 1 : i32
    %33 = arith.index_cast %c1_i32 : i32 to index
    %c0_16 = arith.constant 0 : index
    %c0_17 = arith.constant 0 : index
    %34 = vector.load %arg1[%33, %c0_16, %c0_17] : memref<8x16x128xf32, #tpu.memory_space<vmem>>, vector<1x16x128xf32>
    %35 = vector.shape_cast %34 : vector<1x16x128xf32> to vector<16x128xf32>
    %cst_18 = arith.constant 0.899999976 : f32
    %36 = vector.broadcast %cst_18 : f32 to vector<16x128xf32>
    %37 = arith.mulf %36, %27 : vector<16x128xf32>
    %cst_19 = arith.constant -7.000000e+00 : f32
    %38 = vector.broadcast %cst_19 : f32 to vector<16x128xf32>
    %39 = arith.addf %37, %38 : vector<16x128xf32>
    %cst_20 = arith.constant 1.000000e-01 : f32
    %40 = vector.broadcast %cst_20 : f32 to vector<16x128xf32>
    %41 = arith.mulf %27, %40 : vector<16x128xf32>
    %42 = math.exp %41 : vector<16x128xf32>
    %cst_21 = arith.constant 244.691925 : f32
    %43 = vector.broadcast %cst_21 : f32 to vector<16x128xf32>
    %44 = arith.mulf %43, %42 : vector<16x128xf32>
    %45 = arith.addf %39, %44 : vector<16x128xf32>
    %cst_22 = arith.constant 5.000000e-01 : f32
    %46 = vector.broadcast %cst_22 : f32 to vector<16x128xf32>
    %47 = arith.mulf %46, %35 : vector<16x128xf32>
    %48 = arith.addf %45, %47 : vector<16x128xf32>
    %cst_23 = arith.constant -5.500000e+01 : f32
    %49 = vector.broadcast %cst_23 : f32 to vector<16x128xf32>
    %50 = arith.cmpf oge, %48, %49 : vector<16x128xf32>
    %51 = arith.extui %50 : vector<16x128xi1> to vector<16x128xi32>
    %52 = arith.sitofp %51 : vector<16x128xi32> to vector<16x128xf32>
    %cst_24 = arith.constant -7.000000e+01 : f32
    %53 = vector.broadcast %cst_24 : f32 to vector<16x128xf32>
    %54 = arith.select %50, %53, %48 : vector<16x128xi1>, vector<16x128xf32>
    %cst_25 = arith.constant 0.904837429 : f32
    %55 = vector.broadcast %cst_25 : f32 to vector<16x128xf32>
    %56 = arith.mulf %32, %55 : vector<16x128xf32>
    %cst_26 = arith.constant 1.000000e+00 : f32
    %57 = vector.broadcast %cst_26 : f32 to vector<16x128xf32>
    %58 = arith.mulf %57, %52 : vector<16x128xf32>
    %59 = arith.addf %56, %58 : vector<16x128xf32>
    %c2_i32 = arith.constant 2 : i32
    %60 = arith.index_cast %c2_i32 : i32 to index
    %c0_27 = arith.constant 0 : index
    %c0_28 = arith.constant 0 : index
    %61 = vector.load %arg1[%60, %c0_27, %c0_28] : memref<8x16x128xf32, #tpu.memory_space<vmem>>, vector<1x16x128xf32>
    %62 = vector.shape_cast %61 : vector<1x16x128xf32> to vector<16x128xf32>
    %cst_29 = arith.constant 0.899999976 : f32
    %63 = vector.broadcast %cst_29 : f32 to vector<16x128xf32>
    %64 = arith.mulf %63, %54 : vector<16x128xf32>
    %cst_30 = arith.constant -7.000000e+00 : f32
    %65 = vector.broadcast %cst_30 : f32 to vector<16x128xf32>
    %66 = arith.addf %64, %65 : vector<16x128xf32>
    %cst_31 = arith.constant 1.000000e-01 : f32
    %67 = vector.broadcast %cst_31 : f32 to vector<16x128xf32>
    %68 = arith.mulf %54, %67 : vector<16x128xf32>
    %69 = math.exp %68 : vector<16x128xf32>
    %cst_32 = arith.constant 244.691925 : f32
    %70 = vector.broadcast %cst_32 : f32 to vector<16x128xf32>
    %71 = arith.mulf %70, %69 : vector<16x128xf32>
    %72 = arith.addf %66, %71 : vector<16x128xf32>
    %cst_33 = arith.constant 5.000000e-01 : f32
    %73 = vector.broadcast %cst_33 : f32 to vector<16x128xf32>
    %74 = arith.mulf %73, %62 : vector<16x128xf32>
    %75 = arith.addf %72, %74 : vector<16x128xf32>
    %cst_34 = arith.constant -5.500000e+01 : f32
    %76 = vector.broadcast %cst_34 : f32 to vector<16x128xf32>
    %77 = arith.cmpf oge, %75, %76 : vector<16x128xf32>
    %78 = arith.extui %77 : vector<16x128xi1> to vector<16x128xi32>
    %79 = arith.sitofp %78 : vector<16x128xi32> to vector<16x128xf32>
    %cst_35 = arith.constant -7.000000e+01 : f32
    %80 = vector.broadcast %cst_35 : f32 to vector<16x128xf32>
    %81 = arith.select %77, %80, %75 : vector<16x128xi1>, vector<16x128xf32>
    %cst_36 = arith.constant 0.904837429 : f32
    %82 = vector.broadcast %cst_36 : f32 to vector<16x128xf32>
    %83 = arith.mulf %59, %82 : vector<16x128xf32>
    %cst_37 = arith.constant 1.000000e+00 : f32
    %84 = vector.broadcast %cst_37 : f32 to vector<16x128xf32>
    %85 = arith.mulf %84, %79 : vector<16x128xf32>
    %86 = arith.addf %83, %85 : vector<16x128xf32>
    %c3_i32 = arith.constant 3 : i32
    %87 = arith.index_cast %c3_i32 : i32 to index
    %c0_38 = arith.constant 0 : index
    %c0_39 = arith.constant 0 : index
    %88 = vector.load %arg1[%87, %c0_38, %c0_39] : memref<8x16x128xf32, #tpu.memory_space<vmem>>, vector<1x16x128xf32>
    %89 = vector.shape_cast %88 : vector<1x16x128xf32> to vector<16x128xf32>
    %cst_40 = arith.constant 0.899999976 : f32
    %90 = vector.broadcast %cst_40 : f32 to vector<16x128xf32>
    %91 = arith.mulf %90, %81 : vector<16x128xf32>
    %cst_41 = arith.constant -7.000000e+00 : f32
    %92 = vector.broadcast %cst_41 : f32 to vector<16x128xf32>
    %93 = arith.addf %91, %92 : vector<16x128xf32>
    %cst_42 = arith.constant 1.000000e-01 : f32
    %94 = vector.broadcast %cst_42 : f32 to vector<16x128xf32>
    %95 = arith.mulf %81, %94 : vector<16x128xf32>
    %96 = math.exp %95 : vector<16x128xf32>
    %cst_43 = arith.constant 244.691925 : f32
    %97 = vector.broadcast %cst_43 : f32 to vector<16x128xf32>
    %98 = arith.mulf %97, %96 : vector<16x128xf32>
    %99 = arith.addf %93, %98 : vector<16x128xf32>
    %cst_44 = arith.constant 5.000000e-01 : f32
    %100 = vector.broadcast %cst_44 : f32 to vector<16x128xf32>
    %101 = arith.mulf %100, %89 : vector<16x128xf32>
    %102 = arith.addf %99, %101 : vector<16x128xf32>
    %cst_45 = arith.constant -5.500000e+01 : f32
    %103 = vector.broadcast %cst_45 : f32 to vector<16x128xf32>
    %104 = arith.cmpf oge, %102, %103 : vector<16x128xf32>
    %105 = arith.extui %104 : vector<16x128xi1> to vector<16x128xi32>
    %106 = arith.sitofp %105 : vector<16x128xi32> to vector<16x128xf32>
    %cst_46 = arith.constant -7.000000e+01 : f32
    %107 = vector.broadcast %cst_46 : f32 to vector<16x128xf32>
    %108 = arith.select %104, %107, %102 : vector<16x128xi1>, vector<16x128xf32>
    %cst_47 = arith.constant 0.904837429 : f32
    %109 = vector.broadcast %cst_47 : f32 to vector<16x128xf32>
    %110 = arith.mulf %86, %109 : vector<16x128xf32>
    %cst_48 = arith.constant 1.000000e+00 : f32
    %111 = vector.broadcast %cst_48 : f32 to vector<16x128xf32>
    %112 = arith.mulf %111, %106 : vector<16x128xf32>
    %113 = arith.addf %110, %112 : vector<16x128xf32>
    %c4_i32 = arith.constant 4 : i32
    %114 = arith.index_cast %c4_i32 : i32 to index
    %c0_49 = arith.constant 0 : index
    %c0_50 = arith.constant 0 : index
    %115 = vector.load %arg1[%114, %c0_49, %c0_50] : memref<8x16x128xf32, #tpu.memory_space<vmem>>, vector<1x16x128xf32>
    %116 = vector.shape_cast %115 : vector<1x16x128xf32> to vector<16x128xf32>
    %cst_51 = arith.constant 0.899999976 : f32
    %117 = vector.broadcast %cst_51 : f32 to vector<16x128xf32>
    %118 = arith.mulf %117, %108 : vector<16x128xf32>
    %cst_52 = arith.constant -7.000000e+00 : f32
    %119 = vector.broadcast %cst_52 : f32 to vector<16x128xf32>
    %120 = arith.addf %118, %119 : vector<16x128xf32>
    %cst_53 = arith.constant 1.000000e-01 : f32
    %121 = vector.broadcast %cst_53 : f32 to vector<16x128xf32>
    %122 = arith.mulf %108, %121 : vector<16x128xf32>
    %123 = math.exp %122 : vector<16x128xf32>
    %cst_54 = arith.constant 244.691925 : f32
    %124 = vector.broadcast %cst_54 : f32 to vector<16x128xf32>
    %125 = arith.mulf %124, %123 : vector<16x128xf32>
    %126 = arith.addf %120, %125 : vector<16x128xf32>
    %cst_55 = arith.constant 5.000000e-01 : f32
    %127 = vector.broadcast %cst_55 : f32 to vector<16x128xf32>
    %128 = arith.mulf %127, %116 : vector<16x128xf32>
    %129 = arith.addf %126, %128 : vector<16x128xf32>
    %cst_56 = arith.constant -5.500000e+01 : f32
    %130 = vector.broadcast %cst_56 : f32 to vector<16x128xf32>
    %131 = arith.cmpf oge, %129, %130 : vector<16x128xf32>
    %132 = arith.extui %131 : vector<16x128xi1> to vector<16x128xi32>
    %133 = arith.sitofp %132 : vector<16x128xi32> to vector<16x128xf32>
    %cst_57 = arith.constant -7.000000e+01 : f32
    %134 = vector.broadcast %cst_57 : f32 to vector<16x128xf32>
    %135 = arith.select %131, %134, %129 : vector<16x128xi1>, vector<16x128xf32>
    %cst_58 = arith.constant 0.904837429 : f32
    %136 = vector.broadcast %cst_58 : f32 to vector<16x128xf32>
    %137 = arith.mulf %113, %136 : vector<16x128xf32>
    %cst_59 = arith.constant 1.000000e+00 : f32
    %138 = vector.broadcast %cst_59 : f32 to vector<16x128xf32>
    %139 = arith.mulf %138, %133 : vector<16x128xf32>
    %140 = arith.addf %137, %139 : vector<16x128xf32>
    %c5_i32 = arith.constant 5 : i32
    %141 = arith.index_cast %c5_i32 : i32 to index
    %c0_60 = arith.constant 0 : index
    %c0_61 = arith.constant 0 : index
    %142 = vector.load %arg1[%141, %c0_60, %c0_61] : memref<8x16x128xf32, #tpu.memory_space<vmem>>, vector<1x16x128xf32>
    %143 = vector.shape_cast %142 : vector<1x16x128xf32> to vector<16x128xf32>
    %cst_62 = arith.constant 0.899999976 : f32
    %144 = vector.broadcast %cst_62 : f32 to vector<16x128xf32>
    %145 = arith.mulf %144, %135 : vector<16x128xf32>
    %cst_63 = arith.constant -7.000000e+00 : f32
    %146 = vector.broadcast %cst_63 : f32 to vector<16x128xf32>
    %147 = arith.addf %145, %146 : vector<16x128xf32>
    %cst_64 = arith.constant 1.000000e-01 : f32
    %148 = vector.broadcast %cst_64 : f32 to vector<16x128xf32>
    %149 = arith.mulf %135, %148 : vector<16x128xf32>
    %150 = math.exp %149 : vector<16x128xf32>
    %cst_65 = arith.constant 244.691925 : f32
    %151 = vector.broadcast %cst_65 : f32 to vector<16x128xf32>
    %152 = arith.mulf %151, %150 : vector<16x128xf32>
    %153 = arith.addf %147, %152 : vector<16x128xf32>
    %cst_66 = arith.constant 5.000000e-01 : f32
    %154 = vector.broadcast %cst_66 : f32 to vector<16x128xf32>
    %155 = arith.mulf %154, %143 : vector<16x128xf32>
    %156 = arith.addf %153, %155 : vector<16x128xf32>
    %cst_67 = arith.constant -5.500000e+01 : f32
    %157 = vector.broadcast %cst_67 : f32 to vector<16x128xf32>
    %158 = arith.cmpf oge, %156, %157 : vector<16x128xf32>
    %159 = arith.extui %158 : vector<16x128xi1> to vector<16x128xi32>
    %160 = arith.sitofp %159 : vector<16x128xi32> to vector<16x128xf32>
    %cst_68 = arith.constant -7.000000e+01 : f32
    %161 = vector.broadcast %cst_68 : f32 to vector<16x128xf32>
    %162 = arith.select %158, %161, %156 : vector<16x128xi1>, vector<16x128xf32>
    %cst_69 = arith.constant 0.904837429 : f32
    %163 = vector.broadcast %cst_69 : f32 to vector<16x128xf32>
    %164 = arith.mulf %140, %163 : vector<16x128xf32>
    %cst_70 = arith.constant 1.000000e+00 : f32
    %165 = vector.broadcast %cst_70 : f32 to vector<16x128xf32>
    %166 = arith.mulf %165, %160 : vector<16x128xf32>
    %167 = arith.addf %164, %166 : vector<16x128xf32>
    %c6_i32 = arith.constant 6 : i32
    %168 = arith.index_cast %c6_i32 : i32 to index
    %c0_71 = arith.constant 0 : index
    %c0_72 = arith.constant 0 : index
    %169 = vector.load %arg1[%168, %c0_71, %c0_72] : memref<8x16x128xf32, #tpu.memory_space<vmem>>, vector<1x16x128xf32>
    %170 = vector.shape_cast %169 : vector<1x16x128xf32> to vector<16x128xf32>
    %cst_73 = arith.constant 0.899999976 : f32
    %171 = vector.broadcast %cst_73 : f32 to vector<16x128xf32>
    %172 = arith.mulf %171, %162 : vector<16x128xf32>
    %cst_74 = arith.constant -7.000000e+00 : f32
    %173 = vector.broadcast %cst_74 : f32 to vector<16x128xf32>
    %174 = arith.addf %172, %173 : vector<16x128xf32>
    %cst_75 = arith.constant 1.000000e-01 : f32
    %175 = vector.broadcast %cst_75 : f32 to vector<16x128xf32>
    %176 = arith.mulf %162, %175 : vector<16x128xf32>
    %177 = math.exp %176 : vector<16x128xf32>
    %cst_76 = arith.constant 244.691925 : f32
    %178 = vector.broadcast %cst_76 : f32 to vector<16x128xf32>
    %179 = arith.mulf %178, %177 : vector<16x128xf32>
    %180 = arith.addf %174, %179 : vector<16x128xf32>
    %cst_77 = arith.constant 5.000000e-01 : f32
    %181 = vector.broadcast %cst_77 : f32 to vector<16x128xf32>
    %182 = arith.mulf %181, %170 : vector<16x128xf32>
    %183 = arith.addf %180, %182 : vector<16x128xf32>
    %cst_78 = arith.constant -5.500000e+01 : f32
    %184 = vector.broadcast %cst_78 : f32 to vector<16x128xf32>
    %185 = arith.cmpf oge, %183, %184 : vector<16x128xf32>
    %186 = arith.extui %185 : vector<16x128xi1> to vector<16x128xi32>
    %187 = arith.sitofp %186 : vector<16x128xi32> to vector<16x128xf32>
    %cst_79 = arith.constant -7.000000e+01 : f32
    %188 = vector.broadcast %cst_79 : f32 to vector<16x128xf32>
    %189 = arith.select %185, %188, %183 : vector<16x128xi1>, vector<16x128xf32>
    %cst_80 = arith.constant 0.904837429 : f32
    %190 = vector.broadcast %cst_80 : f32 to vector<16x128xf32>
    %191 = arith.mulf %167, %190 : vector<16x128xf32>
    %cst_81 = arith.constant 1.000000e+00 : f32
    %192 = vector.broadcast %cst_81 : f32 to vector<16x128xf32>
    %193 = arith.mulf %192, %187 : vector<16x128xf32>
    %194 = arith.addf %191, %193 : vector<16x128xf32>
    %c7_i32 = arith.constant 7 : i32
    %195 = arith.index_cast %c7_i32 : i32 to index
    %c0_82 = arith.constant 0 : index
    %c0_83 = arith.constant 0 : index
    %196 = vector.load %arg1[%195, %c0_82, %c0_83] : memref<8x16x128xf32, #tpu.memory_space<vmem>>, vector<1x16x128xf32>
    %197 = vector.shape_cast %196 : vector<1x16x128xf32> to vector<16x128xf32>
    %cst_84 = arith.constant 0.899999976 : f32
    %198 = vector.broadcast %cst_84 : f32 to vector<16x128xf32>
    %199 = arith.mulf %198, %189 : vector<16x128xf32>
    %cst_85 = arith.constant -7.000000e+00 : f32
    %200 = vector.broadcast %cst_85 : f32 to vector<16x128xf32>
    %201 = arith.addf %199, %200 : vector<16x128xf32>
    %cst_86 = arith.constant 1.000000e-01 : f32
    %202 = vector.broadcast %cst_86 : f32 to vector<16x128xf32>
    %203 = arith.mulf %189, %202 : vector<16x128xf32>
    %204 = math.exp %203 : vector<16x128xf32>
    %cst_87 = arith.constant 244.691925 : f32
    %205 = vector.broadcast %cst_87 : f32 to vector<16x128xf32>
    %206 = arith.mulf %205, %204 : vector<16x128xf32>
    %207 = arith.addf %201, %206 : vector<16x128xf32>
    %cst_88 = arith.constant 5.000000e-01 : f32
    %208 = vector.broadcast %cst_88 : f32 to vector<16x128xf32>
    %209 = arith.mulf %208, %197 : vector<16x128xf32>
    %210 = arith.addf %207, %209 : vector<16x128xf32>
    %cst_89 = arith.constant -5.500000e+01 : f32
    %211 = vector.broadcast %cst_89 : f32 to vector<16x128xf32>
    %212 = arith.cmpf oge, %210, %211 : vector<16x128xf32>
    %213 = arith.extui %212 : vector<16x128xi1> to vector<16x128xi32>
    %214 = arith.sitofp %213 : vector<16x128xi32> to vector<16x128xf32>
    %cst_90 = arith.constant -7.000000e+01 : f32
    %215 = vector.broadcast %cst_90 : f32 to vector<16x128xf32>
    %216 = arith.select %212, %215, %210 : vector<16x128xi1>, vector<16x128xf32>
    %cst_91 = arith.constant 0.904837429 : f32
    %217 = vector.broadcast %cst_91 : f32 to vector<16x128xf32>
    %218 = arith.mulf %194, %217 : vector<16x128xf32>
    %cst_92 = arith.constant 1.000000e+00 : f32
    %219 = vector.broadcast %cst_92 : f32 to vector<16x128xf32>
    %220 = arith.mulf %219, %214 : vector<16x128xf32>
    %221 = arith.addf %218, %220 : vector<16x128xf32>
    %c8_i32 = arith.constant 8 : i32
    %c0_93 = arith.constant 0 : index
    %c0_94 = arith.constant 0 : index
    %222 = vector.load %arg4[%c0_93, %c0_94] : memref<16x128xf32, #tpu.memory_space<vmem>>, vector<16x128xf32>
    tpu.vector_store %arg4[%c0_93, %c0_94], %216 {strides = array<i32>} : memref<16x128xf32, #tpu.memory_space<vmem>>, vector<16x128xf32>,
    %c0_95 = arith.constant 0 : index
    %c0_96 = arith.constant 0 : index
    %223 = vector.load %arg6[%c0_95, %c0_96] : memref<16x128xf32, #tpu.memory_space<vmem>>, vector<16x128xf32>
    tpu.vector_store %arg6[%c0_95, %c0_96], %221 {strides = array<i32>} : memref<16x128xf32, #tpu.memory_space<vmem>>, vector<16x128xf32>,
    %c0_i32_97 = arith.constant 0 : i32
    %224 = arith.cmpi eq, %arg0, %c0_i32_97 : i32
    %225 = arith.extui %224 : i1 to i32
    %c0_i32_98 = arith.constant 0 : i32
    %226 = arith.cmpi ne, %225, %c0_i32_98 : i32
    scf.if %226 {
      %c0_99 = arith.constant 0 : index
      %c0_100 = arith.constant 0 : index
      %227 = vector.load %arg5[%c0_99, %c0_100] : memref<16x128xf32, #tpu.memory_space<vmem>>, vector<16x128xf32>
      tpu.vector_store %arg5[%c0_99, %c0_100], %214 {strides = array<i32>} : memref<16x128xf32, #tpu.memory_space<vmem>>, vector<16x128xf32>,
    } else {
    }
    return
  }
  func.func @transform_0(%arg0: i32) -> (i32, i32, i32) {
    %c0_i32 = arith.constant 0 : i32
    %c0_i32_0 = arith.constant 0 : i32
    %c0_i32_1 = arith.constant 0 : i32
    return %arg0, %c0_i32, %c0_i32_0 : i32, i32, i32
  }
  func.func @transform_1(%arg0: i32) -> (i32, i32) {
    %c0_i32 = arith.constant 0 : i32
    %c0_i32_0 = arith.constant 0 : i32
    %c0_i32_1 = arith.constant 0 : i32
    return %c0_i32, %c0_i32_0 : i32, i32
  }
  func.func @transform_2(%arg0: i32) -> (i32, i32) {
    %c0_i32 = arith.constant 0 : i32
    %c0_i32_0 = arith.constant 0 : i32
    %c0_i32_1 = arith.constant 0 : i32
    return %c0_i32, %c0_i32_0 : i32, i32
  }
  func.func @transform_3(%arg0: i32) -> (i32, i32) {
    %c0_i32 = arith.constant 0 : i32
    %c0_i32_0 = arith.constant 0 : i32
    %c0_i32_1 = arith.constant 0 : i32
    return %c0_i32, %c0_i32_0 : i32, i32
  }
  func.func @transform_4(%arg0: i32) -> (i32, i32) {
    %c0_i32 = arith.constant 0 : i32
    %c0_i32_0 = arith.constant 0 : i32
    %c0_i32_1 = arith.constant 0 : i32
    return %c0_i32, %c0_i32_0 : i32, i32
  }
  func.func @transform_5(%arg0: i32) -> (i32, i32) {
    %c0_i32 = arith.constant 0 : i32
    %c0_i32_0 = arith.constant 0 : i32
    %c0_i32_1 = arith.constant 0 : i32
    return %c0_i32, %c0_i32_0 : i32, i32
  }
}

</mosaic_0001>

<llo_original>
// kernel: elif_forward.1
$region0: #{elif_forward.1}
  #allocation0 [shape = 'u32[]', space=smem, size = 0x4, offset = 0x4, fixed_abs, tag = 'smem constant byte address 0x4 - core index']
  #allocation1 [shape = 'u32[72,128]{1,0:T(1,128)}', space=vmem, size = 0x9000, scoped, tag = 'internal scratch']
  %s0 = inlined_call_operand.vmem [shape: f32[8,16,128], index: 0, kind: input, shape index: {}]
  %s1 = inlined_call_operand.vmem [shape: f32[16,128], index: 1, kind: input, shape index: {}, may-alias: {1,3}]
  %s2 = inlined_call_operand.vmem [shape: f32[16,128], index: 2, kind: input, shape index: {}, may-alias: {2,5}]
  %s3 = inlined_call_operand.vmem [shape: f32[16,128], index: 3, kind: output, shape index: {0}, may-alias: {1,3}]
  %s4 = inlined_call_operand.vmem [shape: f32[16,128], index: 4, kind: output, shape index: {1}]
  %s5 = inlined_call_operand.vmem [shape: f32[16,128], index: 5, kind: output, shape index: {2}, may-alias: {2,5}]
  %6 = xla_tuple %s3, %s4, %s5
  %s7 = sld [smem:[#allocation0]]
  $region46: #{elif_forward.1} parent=0
    _
  %s9 = ssub.s32 1, %s7
  %s10 = scalar_select 0, %s9, %s7
  // Predicated region
  $region2: #{elif_forward.1} parent=0 // pred_check
    _
  $region3: #{elif_forward.1} parent=0 // pred_check_branch
    %12 = sbr.rel (0) target = $region5
  $region4: #{elif_forward.1} parent=0 // pred_region
    _
  $region5: #{elif_forward.1} parent=0 // pred_fallthru
    _
  // Predicated region
  $region6: #{elif_forward.1} parent=0 // pred_check
    _
  $region7: #{elif_forward.1} parent=0 // pred_check_branch
    %14 = sbr.rel (0) target = $region9
  $region8: #{elif_forward.1} parent=0 // pred_region
    _
  $region9: #{elif_forward.1} parent=0 // pred_fallthru
    _
  // Predicated region
  $region10: #{elif_forward.1} parent=0 // pred_check
    _
  $region11: #{elif_forward.1} parent=0 // pred_check_branch
    %16 = sbr.rel (0) target = $region13
  $region12: #{elif_forward.1} parent=0 // pred_region
    _
  $region13: #{elif_forward.1} parent=0 // pred_fallthru
    _
  %p17 = scmp.eq.s32.totalorder 0, 0
  // Predicated region
  $region14: #{elif_forward.1} parent=0 // pred_check
    %p18 = pneg %p17
  $region15: #{elif_forward.1} parent=0 // pred_check_branch
    %20 = sbr.rel (%p18) target = $region17
  $region16: #{elif_forward.1} parent=0 // pred_region
    %v21 = vld [vmem:[%s1] sm:$0xff]
    %v22 = vld [vmem:[%s1 + $0x8] sm:$0xff]
    %23 = vst [vmem:[%s3] sm:$0xff] %v21
    %24 = vst [vmem:[%s3 + $0x8] sm:$0xff] %v22
    %v25 = vld [vmem:[%s2] sm:$0xff]
    %v26 = vld [vmem:[%s2 + $0x8] sm:$0xff]
    %27 = vst [vmem:[%s5] sm:$0xff] %v25
    %28 = vst [vmem:[%s5 + $0x8] sm:$0xff] %v26
  $region17: #{elif_forward.1} parent=0 // pred_fallthru
    _
  %v29 = vld [vmem:[%s3] sm:$0xff]
  %v30 = vld [vmem:[%s3 + $0x8] sm:$0xff]
  %v31 = vld [vmem:[%s5] sm:$0xff]
  %v32 = vld [vmem:[%s5 + $0x8] sm:$0xff]
  %v33 = vld [vmem:[%s0] sm:$0xff]
  %v34 = vld [vmem:[%s0 + $0x8] sm:$0xff]
  %v35 = vmul.f32 %v29, 0.9
  %v36 = vmul.f32 %v30, 0.9
  %v37 = vadd.f32 %v35, -7.0
  %v38 = vadd.f32 %v36, -7.0
  %v39 = vmul.f32 %v29, 0.1
  %v40 = vmul.f32 %v30, 0.1
  %v41 = vmul.f32 %v39, 1.442695
  %v42 = vpow.pop %v41
  %v43 = vmul.f32 %v40, 1.442695
  %v44 = vpow.pop %v43
  %v45 = vmul.f32 %v42, 244.69193
  %v46 = vmul.f32 %v44, 244.69193
  %v47 = vadd.f32 %v37, %v45
  %v48 = vadd.f32 %v38, %v46
  %v49 = vmul.f32 %v33, 0.5
  %v50 = vmul.f32 %v34, 0.5
  %v51 = vadd.f32 %v47, %v49
  %v52 = vadd.f32 %v48, %v50
  %vm53 = vcmp.ge.f32.partialorder %v51, -55.0
  %vm54 = vcmp.ge.f32.partialorder %v52, -55.0
  %v55 = vsel %vm53, 1, 0
  %v56 = vsel %vm54, 1, 0
  %v57 = vcvt.s32.f32 %v55
  %v58 = vcvt.s32.f32 %v56
  %v59 = vsel %vm53, -70.0, %v51
  %v60 = vsel %vm54, -70.0, %v52
  %v61 = vmul.f32 %v31, 0.9048374
  %v62 = vmul.f32 %v32, 0.9048374
  %v63 = vadd.f32 %v61, %v57
  %v64 = vadd.f32 %v62, %v58
  %s65 = scalar_lea.vmem %s0, 16
  %v66 = vld [vmem:[%s65] sm:$0xff]
  %v67 = vld [vmem:[%s65 + $0x8] sm:$0xff]
  %v68 = vmul.f32 %v59, 0.9
  %v69 = vmul.f32 %v60, 0.9
  %v70 = vadd.f32 %v68, -7.0
  %v71 = vadd.f32 %v69, -7.0
  %v72 = vmul.f32 %v59, 0.1
  %v73 = vmul.f32 %v60, 0.1
  %v74 = vmul.f32 %v72, 1.442695
  %v75 = vpow.pop %v74
  %v76 = vmul.f32 %v73, 1.442695
  %v77 = vpow.pop %v76
  %v78 = vmul.f32 %v75, 244.69193
  %v79 = vmul.f32 %v77, 244.69193
  %v80 = vadd.f32 %v70, %v78
  %v81 = vadd.f32 %v71, %v79
  %v82 = vmul.f32 %v66, 0.5
  %v83 = vmul.f32 %v67, 0.5
  %v84 = vadd.f32 %v80, %v82
  %v85 = vadd.f32 %v81, %v83
  %vm86 = vcmp.ge.f32.partialorder %v84, -55.0
  %vm87 = vcmp.ge.f32.partialorder %v85, -55.0
  %v88 = vsel %vm86, 1, 0
  %v89 = vsel %vm87, 1, 0
  %v90 = vcvt.s32.f32 %v88
  %v91 = vcvt.s32.f32 %v89
  %v92 = vsel %vm86, -70.0, %v84
  %v93 = vsel %vm87, -70.0, %v85
  %v94 = vmul.f32 %v63, 0.9048374
  %v95 = vmul.f32 %v64, 0.9048374
  %v96 = vadd.f32 %v94, %v90
  %v97 = vadd.f32 %v95, %v91
  %s98 = scalar_lea.vmem %s0, 32
  %v99 = vld [vmem:[%s98] sm:$0xff]
  %v100 = vld [vmem:[%s98 + $0x8] sm:$0xff]
  %v101 = vmul.f32 %v92, 0.9
  %v102 = vmul.f32 %v93, 0.9
  %v103 = vadd.f32 %v101, -7.0
  %v104 = vadd.f32 %v102, -7.0
  %v105 = vmul.f32 %v92, 0.1
  %v106 = vmul.f32 %v93, 0.1
  %v107 = vmul.f32 %v105, 1.442695
  %v108 = vpow.pop %v107
  %v109 = vmul.f32 %v106, 1.442695
  %v110 = vpow.pop %v109
  %v111 = vmul.f32 %v108, 244.69193
  %v112 = vmul.f32 %v110, 244.69193
  %v113 = vadd.f32 %v103, %v111
  %v114 = vadd.f32 %v104, %v112
  %v115 = vmul.f32 %v99, 0.5
  %v116 = vmul.f32 %v100, 0.5
  %v117 = vadd.f32 %v113, %v115
  %v118 = vadd.f32 %v114, %v116
  %vm119 = vcmp.ge.f32.partialorder %v117, -55.0
  %vm120 = vcmp.ge.f32.partialorder %v118, -55.0
  %v121 = vsel %vm119, 1, 0
  %v122 = vsel %vm120, 1, 0
  %v123 = vcvt.s32.f32 %v121
  %v124 = vcvt.s32.f32 %v122
  %v125 = vsel %vm119, -70.0, %v117
  %v126 = vsel %vm120, -70.0, %v118
  %v127 = vmul.f32 %v96, 0.9048374
  %v128 = vmul.f32 %v97, 0.9048374
  %v129 = vadd.f32 %v127, %v123
  %v130 = vadd.f32 %v128, %v124
  %s131 = scalar_lea.vmem %s0, 48
  %v132 = vld [vmem:[%s131] sm:$0xff]
  %v133 = vld [vmem:[%s131 + $0x8] sm:$0xff]
  %v134 = vmul.f32 %v125, 0.9
  %v135 = vmul.f32 %v126, 0.9
  %v136 = vadd.f32 %v134, -7.0
  %v137 = vadd.f32 %v135, -7.0
  %v138 = vmul.f32 %v125, 0.1
  %v139 = vmul.f32 %v126, 0.1
  %v140 = vmul.f32 %v138, 1.442695
  %v141 = vpow.pop %v140
  %v142 = vmul.f32 %v139, 1.442695
  %v143 = vpow.pop %v142
  %v144 = vmul.f32 %v141, 244.69193
  %v145 = vmul.f32 %v143, 244.69193
  %v146 = vadd.f32 %v136, %v144
  %v147 = vadd.f32 %v137, %v145
  %v148 = vmul.f32 %v132, 0.5
  %v149 = vmul.f32 %v133, 0.5
  %v150 = vadd.f32 %v146, %v148
  %v151 = vadd.f32 %v147, %v149
  %vm152 = vcmp.ge.f32.partialorder %v150, -55.0
  %vm153 = vcmp.ge.f32.partialorder %v151, -55.0
  %v154 = vsel %vm152, 1, 0
  %v155 = vsel %vm153, 1, 0
  %v156 = vcvt.s32.f32 %v154
  %v157 = vcvt.s32.f32 %v155
  %v158 = vsel %vm152, -70.0, %v150
  %v159 = vsel %vm153, -70.0, %v151
  %v160 = vmul.f32 %v129, 0.9048374
  %v161 = vmul.f32 %v130, 0.9048374
  %v162 = vadd.f32 %v160, %v156
  %v163 = vadd.f32 %v161, %v157
  %s164 = scalar_lea.vmem %s0, 64
  %v165 = vld [vmem:[%s164] sm:$0xff]
  %v166 = vld [vmem:[%s164 + $0x8] sm:$0xff]
  %v167 = vmul.f32 %v158, 0.9
  %v168 = vmul.f32 %v159, 0.9
  %v169 = vadd.f32 %v167, -7.0
  %v170 = vadd.f32 %v168, -7.0
  %v171 = vmul.f32 %v158, 0.1
  %v172 = vmul.f32 %v159, 0.1
  %v173 = vmul.f32 %v171, 1.442695
  %v174 = vpow.pop %v173
  %v175 = vmul.f32 %v172, 1.442695
  %v176 = vpow.pop %v175
  %v177 = vmul.f32 %v174, 244.69193
  %v178 = vmul.f32 %v176, 244.69193
  %v179 = vadd.f32 %v169, %v177
  %v180 = vadd.f32 %v170, %v178
  %v181 = vmul.f32 %v165, 0.5
  %v182 = vmul.f32 %v166, 0.5
  %v183 = vadd.f32 %v179, %v181
  %v184 = vadd.f32 %v180, %v182
  %vm185 = vcmp.ge.f32.partialorder %v183, -55.0
  %vm186 = vcmp.ge.f32.partialorder %v184, -55.0
  %v187 = vsel %vm185, 1, 0
  %v188 = vsel %vm186, 1, 0
  %v189 = vcvt.s32.f32 %v187
  %v190 = vcvt.s32.f32 %v188
  %v191 = vsel %vm185, -70.0, %v183
  %v192 = vsel %vm186, -70.0, %v184
  %v193 = vmul.f32 %v162, 0.9048374
  %v194 = vmul.f32 %v163, 0.9048374
  %v195 = vadd.f32 %v193, %v189
  %v196 = vadd.f32 %v194, %v190
  %s197 = scalar_lea.vmem %s0, 80
  %v198 = vld [vmem:[%s197] sm:$0xff]
  %v199 = vld [vmem:[%s197 + $0x8] sm:$0xff]
  %v200 = vmul.f32 %v191, 0.9
  %v201 = vmul.f32 %v192, 0.9
  %v202 = vadd.f32 %v200, -7.0
  %v203 = vadd.f32 %v201, -7.0
  %v204 = vmul.f32 %v191, 0.1
  %v205 = vmul.f32 %v192, 0.1
  %v206 = vmul.f32 %v204, 1.442695
  %v207 = vpow.pop %v206
  %v208 = vmul.f32 %v205, 1.442695
  %v209 = vpow.pop %v208
  %v210 = vmul.f32 %v207, 244.69193
  %v211 = vmul.f32 %v209, 244.69193
  %v212 = vadd.f32 %v202, %v210
  %v213 = vadd.f32 %v203, %v211
  %v214 = vmul.f32 %v198, 0.5
  %v215 = vmul.f32 %v199, 0.5
  %v216 = vadd.f32 %v212, %v214
  %v217 = vadd.f32 %v213, %v215
  %vm218 = vcmp.ge.f32.partialorder %v216, -55.0
  %vm219 = vcmp.ge.f32.partialorder %v217, -55.0
  %v220 = vsel %vm218, 1, 0
  %v221 = vsel %vm219, 1, 0
  %v222 = vcvt.s32.f32 %v220
  %v223 = vcvt.s32.f32 %v221
  %v224 = vsel %vm218, -70.0, %v216
  %v225 = vsel %vm219, -70.0, %v217
  %v226 = vmul.f32 %v195, 0.9048374
  %v227 = vmul.f32 %v196, 0.9048374
  %v228 = vadd.f32 %v226, %v222
  %v229 = vadd.f32 %v227, %v223
  %s230 = scalar_lea.vmem %s0, 96
  %v231 = vld [vmem:[%s230] sm:$0xff]
  %v232 = vld [vmem:[%s230 + $0x8] sm:$0xff]
  %v233 = vmul.f32 %v224, 0.9
  %v234 = vmul.f32 %v225, 0.9
  %v235 = vadd.f32 %v233, -7.0
  %v236 = vadd.f32 %v234, -7.0
  %v237 = vmul.f32 %v224, 0.1
  %v238 = vmul.f32 %v225, 0.1
  %v239 = vmul.f32 %v237, 1.442695
  %v240 = vpow.pop %v239
  %v241 = vmul.f32 %v238, 1.442695
  %v242 = vpow.pop %v241
  %v243 = vmul.f32 %v240, 244.69193
  %v244 = vmul.f32 %v242, 244.69193
  %v245 = vadd.f32 %v235, %v243
  %v246 = vadd.f32 %v236, %v244
  %v247 = vmul.f32 %v231, 0.5
  %v248 = vmul.f32 %v232, 0.5
  %v249 = vadd.f32 %v245, %v247
  %v250 = vadd.f32 %v246, %v248
  %vm251 = vcmp.ge.f32.partialorder %v249, -55.0
  %vm252 = vcmp.ge.f32.partialorder %v250, -55.0
  %v253 = vsel %vm251, 1, 0
  %v254 = vsel %vm252, 1, 0
  %v255 = vcvt.s32.f32 %v253
  %v256 = vcvt.s32.f32 %v254
  %v257 = vsel %vm251, -70.0, %v249
  %v258 = vsel %vm252, -70.0, %v250
  %v259 = vmul.f32 %v228, 0.9048374
  %v260 = vmul.f32 %v229, 0.9048374
  %v261 = vadd.f32 %v259, %v255
  %v262 = vadd.f32 %v260, %v256
  %s263 = scalar_lea.vmem %s0, 112
  %v264 = vld [vmem:[%s263] sm:$0xff]
  %v265 = vld [vmem:[%s263 + $0x8] sm:$0xff]
  %v266 = vmul.f32 %v257, 0.9
  %v267 = vmul.f32 %v258, 0.9
  %v268 = vadd.f32 %v266, -7.0
  %v269 = vadd.f32 %v267, -7.0
  %v270 = vmul.f32 %v257, 0.1
  %v271 = vmul.f32 %v258, 0.1
  %v272 = vmul.f32 %v270, 1.442695
  %v273 = vpow.pop %v272
  %v274 = vmul.f32 %v271, 1.442695
  %v275 = vpow.pop %v274
  %v276 = vmul.f32 %v273, 244.69193
  %v277 = vmul.f32 %v275, 244.69193
  %v278 = vadd.f32 %v268, %v276
  %v279 = vadd.f32 %v269, %v277
  %v280 = vmul.f32 %v264, 0.5
  %v281 = vmul.f32 %v265, 0.5
  %v282 = vadd.f32 %v278, %v280
  %v283 = vadd.f32 %v279, %v281
  %vm284 = vcmp.ge.f32.partialorder %v282, -55.0
  %vm285 = vcmp.ge.f32.partialorder %v283, -55.0
  %v286 = vsel %vm284, 1, 0
  %v287 = vsel %vm285, 1, 0
  %v288 = vcvt.s32.f32 %v286
  %v289 = vcvt.s32.f32 %v287
  %v290 = vsel %vm284, -70.0, %v282
  %v291 = vsel %vm285, -70.0, %v283
  %v292 = vmul.f32 %v261, 0.9048374
  %v293 = vmul.f32 %v262, 0.9048374
  %v294 = vadd.f32 %v292, %v288
  %v295 = vadd.f32 %v293, %v289
  %296 = vst [vmem:[%s3] sm:$0xff] %v290
  %297 = vst [vmem:[%s3 + $0x8] sm:$0xff] %v291
  %298 = vst [vmem:[%s5] sm:$0xff] %v294
  %299 = vst [vmem:[%s5 + $0x8] sm:$0xff] %v295
  // Predicated region
  $region18: #{elif_forward.1} parent=0 // pred_check
    %p300 = pneg %p17
  $region19: #{elif_forward.1} parent=0 // pred_check_branch
    %302 = sbr.rel (%p300) target = $region21
  $region20: #{elif_forward.1} parent=0 // pred_region
    %303 = vst [vmem:[%s4] sm:$0xff] %v288
    %304 = vst [vmem:[%s4 + $0x8] sm:$0xff] %v289
  $region21: #{elif_forward.1} parent=0 // pred_fallthru
    _
  // Predicated region
  $region22: #{elif_forward.1} parent=0 // pred_check
    _
  $region23: #{elif_forward.1} parent=0 // pred_check_branch
    %306 = sbr.rel (0) target = $region25
  $region24: #{elif_forward.1} parent=0 // pred_region
    _
  $region25: #{elif_forward.1} parent=0 // pred_fallthru
    _
  // Predicated region
  $region26: #{elif_forward.1} parent=0 // pred_check
    _
  $region27: #{elif_forward.1} parent=0 // pred_check_branch
    %308 = sbr.rel (0) target = $region29
  $region28: #{elif_forward.1} parent=0 // pred_region
    _
  $region29: #{elif_forward.1} parent=0 // pred_fallthru
    _
  // Predicated region
  $region30: #{elif_forward.1} parent=0 // pred_check
    _
  $region31: #{elif_forward.1} parent=0 // pred_check_branch
    %310 = sbr.rel (0) target = $region33
  $region32: #{elif_forward.1} parent=0 // pred_region
    _
  $region33: #{elif_forward.1} parent=0 // pred_fallthru
    _
  // Predicated region
  $region34: #{elif_forward.1} parent=0 // pred_check
    _
  $region35: #{elif_forward.1} parent=0 // pred_check_branch
    %312 = sbr.rel (0) target = $region37
  $region36: #{elif_forward.1} parent=0 // pred_region
    _
  $region37: #{elif_forward.1} parent=0 // pred_fallthru
    _
  // Predicated region
  $region38: #{elif_forward.1} parent=0 // pred_check
    _
  $region39: #{elif_forward.1} parent=0 // pred_check_branch
    %314 = sbr.rel (0) target = $region41
  $region40: #{elif_forward.1} parent=0 // pred_region
    _
  $region41: #{elif_forward.1} parent=0 // pred_fallthru
    _
  // Predicated region
  $region42: #{elif_forward.1} parent=0 // pred_check
    _
  $region43: #{elif_forward.1} parent=0 // pred_check_branch
    %316 = sbr.rel (0) target = $region45
  $region44: #{elif_forward.1} parent=0 // pred_region
    _
  $region45: #{elif_forward.1} parent=0 // pred_fallthru
    _

</llo_original>
